<compile_context>
chip_gen: v7x
topology: tpu7x:2x2x1
jax: 0.10.0
libtpu: 0.0.40
codegen_flags: <defaults>
</compile_context>

<pallas_src>
import functools

import jax
import jax.numpy as jnp
from jax.experimental import pallas as pl
from jax.experimental.pallas import tpu as pltpu

LN_EPS = 1e-5  # PyTorch nn.LayerNorm default


def _layernorm(x, gamma, beta):
    # two-pass (centered) moments -- matches nn.LayerNorm numerics more closely than
    # the single-pass E[x^2] - E[x]^2 form.
    mu = jnp.mean(x, axis=-1, keepdims=True)
    xc = x - mu
    var = jnp.mean(xc * xc, axis=-1, keepdims=True)
    return xc * jax.lax.rsqrt(var + LN_EPS) * gamma + beta


def scene_encoded_transformer_kernel(
    img_ref,      # (B_TILE, P, D)    bf16  NHWC-style: pixels on sublanes, channels on lanes
    roi_ref,      # (B_TILE, N, NFB)  bf16
    w_ds_ref,     # (D, NFC)          bf16  1x1 conv weight, pre-transposed to (in, out)
    b_ds_ref,     # (1, NFC)          f32
    w_emb_ref,    # (NFB, NFC)        bf16
    b_emb_ref,    # (1, NFC)          f32
    ln1_g_ref,    # (1, NFC)          f32
    ln1_b_ref,    # (1, NFC)          f32
    ffn_w1_ref,   # (NFC, NFC)        bf16
    ffn_b1_ref,   # (1, NFC)          f32
    ffn_w2_ref,   # (NFC, NFC)        bf16
    ffn_b2_ref,   # (1, NFC)          f32
    ln2_g_ref,    # (1, NFC)          f32
    ln2_b_ref,    # (1, NFC)          f32
    out_ref,      # (B_TILE, N, NFC)  f32
    att_ref,      # (B_TILE, N, P)    f32
):
    b, p, d = img_ref.shape
    n = roi_ref.shape[1]
    nfc = w_ds_ref.shape[1]

    # ---- 1x1 conv over channels: all batch elements in one lane-dense MXU op --------
    # (B*P, D) @ (D, NFC) -> (B*P, NFC); both D and NFC sit on the lane axis.
    img_flat = img_ref[...].reshape(b * p, d)
    img_ds = jnp.dot(img_flat, w_ds_ref[...],
                     preferred_element_type=jnp.float32) + b_ds_ref[...]
    img_ds_bf = img_ds.astype(jnp.bfloat16).reshape(b, p, nfc)            # (B, P, NFC)

    # ---- ROI embedding: rows flattened over (B_TILE * N) ----------------------------
    roi_flat = roi_ref[...].reshape(b * n, -1)
    emb = jnp.dot(roi_flat, w_emb_ref[...],
                  preferred_element_type=jnp.float32) + b_emb_ref[...]    # (B*N, NFC) f32
    emb_bf = emb.astype(jnp.bfloat16).reshape(b, n, nfc)

    # ---- attention scores: batched (B,N,NFC) x (B,P,NFC) contracting NFC -> (B,N,P) --
    scores = jax.lax.dot_general(
        emb_bf, img_ds_bf,
        dimension_numbers=(((2,), (2,)), ((0,), (0,))),
        preferred_element_type=jnp.float32)

    # stabilized softmax over pixels; the divide goes to the EUP via approx reciprocal
    m = jnp.max(scores, axis=-1, keepdims=True)
    e = jnp.exp(scores - m)
    denom = jnp.sum(e, axis=-1, keepdims=True)
    att = e * pl.reciprocal(denom, approx=True)                           # (B, N, P) f32
    att_ref[...] = att.astype(att_ref.dtype)

    # ---- context: batched (B,N,P) x (B,P,NFC) contracting P -> (B,N,NFC) -------------
    ctx = jax.lax.dot_general(
        att.astype(jnp.bfloat16), img_ds_bf,
        dimension_numbers=(((2,), (1,)), ((0,), (0,))),
        preferred_element_type=jnp.float32)

    # ---- residual + LayerNorm1, FFN, residual + LayerNorm2 (rows flattened) ----------
    x = _layernorm(ctx.reshape(b * n, nfc) + emb, ln1_g_ref[...], ln1_b_ref[...])

    h = jnp.dot(x.astype(jnp.bfloat16), ffn_w1_ref[...],
                preferred_element_type=jnp.float32) + ffn_b1_ref[...]
    h = jnp.maximum(h, 0.0)                                               # ReLU; Dropout == id
    h = jnp.dot(h.astype(jnp.bfloat16), ffn_w2_ref[...],
                preferred_element_type=jnp.float32) + ffn_b2_ref[...]
    x = _layernorm(x + h, ln2_g_ref[...], ln2_b_ref[...])

    out_ref[...] = x.reshape(b, n, nfc).astype(out_ref.dtype)


def _tpu_vmem_info():
    """Best-effort per-core VMEM capacity + megacore detection; safe fallbacks."""
    capacity = 128 * 1024 * 1024          # v5e / v6e physical
    known = False
    try:
        info = pltpu.get_tpu_info()
        cap = getattr(info, "vmem_capacity_bytes", None)
        if cap:
            capacity = int(cap)
            known = True
    except Exception:
        pass
    # v7x exposes 64 MiB VMEM per TensorCore and has 2 TCs per chip (megacore);
    # v5e / v6e have 128 MiB and a single TC.
    is_megacore = known and capacity <= (80 * 1024 * 1024)
    return capacity, known, is_megacore


def _block_vmem_bytes(b, *, D, P, N, NFB, NFC, single_buffer_weights):
    """Approximate resident VMEM for one grid step with b batch elements."""
    # grid-dependent blocks are double-buffered by the pipeline
    io = 2 * b * (P * D * 2 + N * NFB * 2 + N * NFC * 4 + N * P * 4)
    wmult = 1 if single_buffer_weights else 2
    weights = wmult * ((D * NFC + NFB * NFC + 2 * NFC * NFC) * 2 + 8 * NFC * 4)
    # f32 / bf16 intermediates that live in the kernel body (img_ds, scores/e/att,
    # emb, ctx, x, h)
    temps = b * (P * NFC * 6 + 3 * N * P * 4 + 4 * N * NFC * 4)
    return io + weights + temps


def _pick_b_tile(BT, fits, *, min_steps):
    """Largest divisor of BT that fits the VMEM budget, honouring min_steps if possible."""
    divisors = [d for d in range(1, BT + 1) if BT % d == 0]
    ok = [d for d in divisors if fits(d)]
    if not ok:
        return 1
    preferred = [d for d in ok if BT // d >= min_steps]
    return max(preferred) if preferred else max(ok)


def scene_encoded_transformer(roi_feature, image_feature, params, *, N, b_tile=None):
    """roi_feature: (BT*N, NFB); image_feature: (BT, 512, OH, OW) (PyTorch NCHW)."""
    BT, D, OH, OW = image_feature.shape
    P = OH * OW
    NFB = roi_feature.shape[-1]
    NFC = params["w_emb"].shape[1]

    vmem_capacity, vmem_known, is_megacore = _tpu_vmem_info()
    vmem_budget = int(vmem_capacity * 0.6)
    # Only v7x (2 TensorCores) benefits from >= 2 grid steps; on single-TC v5e/v6e one
    # fat step maximizes the flattened matmul row count (B_TILE*N) and drops per-step
    # pipeline overhead.  With min_steps=2 the picker prefers exactly 2 fat steps.
    min_steps = 2 if is_megacore else 1

    # Grid-invariant weights: single-buffer them only when their double-buffered
    # footprint is significant (matters for v7x's 64 MiB VMEM at large NFC/D).
    weight_bytes = (D * NFC + NFB * NFC + 2 * NFC * NFC) * 2
    single_buffer_weights = weight_bytes > (8 * 1024 * 1024)

    fits = lambda d: _block_vmem_bytes(
        d, D=D, P=P, N=N, NFB=NFB, NFC=NFC,
        single_buffer_weights=single_buffer_weights) <= vmem_budget
    if b_tile is None:
        b_tile = _pick_b_tile(BT, fits, min_steps=min_steps)
    assert BT % b_tile == 0
    grid = (BT // b_tile,)

    bf = jnp.bfloat16
    # NHWC-style image layout (BT, P, D): D = 512 is lane-dense, so the image block,
    # the conv and every consumer of img_ds keep full vregs even when P < 128.
    img = jnp.transpose(image_feature.reshape(BT, D, P), (0, 2, 1)).astype(bf)
    roi = roi_feature.reshape(BT, N, NFB).astype(bf)

    w_ds = jnp.transpose(params["w_ds"], (1, 0)).astype(bf)     # (D, NFC)
    w_emb = params["w_emb"].astype(bf)                          # (NFB, NFC)
    ffn_w1 = params["ffn_w1"].astype(bf)
    ffn_w2 = params["ffn_w2"].astype(bf)

    def full(shape):
        kwargs = {}
        if single_buffer_weights:
            kwargs["pipeline_mode"] = pl.Buffered(1)
        return pl.BlockSpec(shape, lambda i, s=shape: (0,) * len(s), **kwargs)

    in_specs = [
        pl.BlockSpec((b_tile, P, D), lambda i: (i, 0, 0)),
        pl.BlockSpec((b_tile, N, NFB), lambda i: (i, 0, 0)),
        full((D, NFC)), full((1, NFC)),        # downsample2 (1x1 conv)
        full((NFB, NFC)), full((1, NFC)),      # emb_roi
        full((1, NFC)), full((1, NFC)),        # layernorm1
        full((NFC, NFC)), full((1, NFC)),      # FFN linear 1
        full((NFC, NFC)), full((1, NFC)),      # FFN linear 2
        full((1, NFC)), full((1, NFC)),        # layernorm2
    ]
    out_specs = (
        pl.BlockSpec((b_tile, N, NFC), lambda i: (i, 0, 0)),
        pl.BlockSpec((b_tile, N, P), lambda i: (i, 0, 0)),
    )
    out_shape = (
        jax.ShapeDtypeStruct((BT, N, NFC), jnp.float32),
        jax.ShapeDtypeStruct((BT, N, P), jnp.float32),
    )

    flops = 2 * BT * (P * D * NFC + N * NFB * NFC + 2 * N * P * NFC + 2 * N * NFC * NFC)
    transcendentals = BT * N * (P + 4)
    bytes_accessed = (
        img.size * 2 + roi.size * 2
        + 2 * (D * NFC + NFB * NFC + 2 * NFC * NFC)   # bf16 weights
        + 4 * 8 * NFC                                 # f32 biases + LN params
        + 4 * BT * N * NFC + 4 * BT * N * P           # f32 outputs
    )
    cost = pl.CostEstimate(flops=flops, transcendentals=transcendentals,
                           bytes_accessed=bytes_accessed)

    vmem_limit = None
    if vmem_known:
        vmem_limit = int(min(vmem_capacity * 0.75, 112 * 1024 * 1024))
    compiler_params = pltpu.CompilerParams(
        dimension_semantics=("parallel",),
        vmem_limit_bytes=vmem_limit,
    )

    out, att = pl.pallas_call(
        scene_encoded_transformer_kernel,
        grid_spec=pltpu.PrefetchScalarGridSpec(
            num_scalar_prefetch=0,
            grid=grid,
            in_specs=in_specs,
            out_specs=out_specs,
        ),
        out_shape=out_shape,
        compiler_params=compiler_params,
        cost_estimate=cost,
    )(
        img, roi,
        w_ds, params["b_ds"],
        w_emb, params["b_emb"],
        params["ln1_g"], params["ln1_b"],
        ffn_w1, params["ffn_b1"],
        ffn_w2, params["ffn_b2"],
        params["ln2_g"], params["ln2_b"],
    )
    # context_encoding_roi: (BT*N, NFC); att_map: (BT, N, OH*OW)
    return out.reshape(BT * N, NFC), att


def init_params(key, *, D, NFB, NFC):
    """Deterministic synthetic parameters (shapes match the PyTorch module, layer_id == 1)."""
    ks = jax.random.split(key, 6)
    f32 = jnp.float32
    return {
        # downsample2: Conv2d(512, NFC, 1x1), PyTorch (out, in) layout; bias kept (1, NFC)
        "w_ds": jax.random.normal(ks[0], (NFC, D), f32) * (2.0 / D) ** 0.5,
        "b_ds": jnp.zeros((1, NFC), f32),
        # emb_roi: Linear(NFB, NFC), stored as (in, out)
        "w_emb": jax.random.normal(ks[1], (NFB, NFC), f32) * (1.0 / NFB) ** 0.5,
        "b_emb": jax.random.normal(ks[2], (1, NFC), f32) * 0.01,
        # layernorm1
        "ln1_g": jnp.ones((1, NFC), f32),
        "ln1_b": jnp.zeros((1, NFC), f32),
        # FFN
        "ffn_w1": jax.random.normal(ks[3], (NFC, NFC), f32) * (1.0 / NFC) ** 0.5,
        "ffn_b1": jnp.zeros((1, NFC), f32),
        "ffn_w2": jax.random.normal(ks[4], (NFC, NFC), f32) * (1.0 / NFC) ** 0.5,
        "ffn_b2": jnp.zeros((1, NFC), f32),
        # layernorm2
        "ln2_g": jnp.ones((1, NFC), f32),
        "ln2_b": jnp.zeros((1, NFC), f32),
    }


def reference(roi_feature, image_feature, params, *, N):
    """Pure-JAX reference with the same bf16 matmul / f32 accumulation recipe."""
    BT, D, OH, OW = image_feature.shape
    P = OH * OW
    NFC = params["w_emb"].shape[1]
    bf = jnp.bfloat16
    img = jnp.transpose(image_feature.reshape(BT, D, P), (0, 2, 1)).astype(bf)  # (BT,P,D)
    roi = roi_feature.reshape(BT, N, -1).astype(bf)

    emb = jnp.einsum("bnf,fc->bnc", roi, params["w_emb"].astype(bf),
                     preferred_element_type=jnp.float32) + params["b_emb"]
    img_ds = jnp.einsum("bpd,cd->bpc", img, params["w_ds"].astype(bf),
                        preferred_element_type=jnp.float32) + params["b_ds"]    # (BT,P,NFC)
    scores = jnp.einsum("bnc,bpc->bnp", emb.astype(bf), img_ds.astype(bf),
                        preferred_element_type=jnp.float32)
    att = jax.nn.softmax(scores, axis=-1)
    ctx = jnp.einsum("bnp,bpc->bnc", att.astype(bf), img_ds.astype(bf),
                     preferred_element_type=jnp.float32)

    x = _layernorm((ctx + emb).reshape(BT * N, NFC), params["ln1_g"], params["ln1_b"])
    h = jnp.dot(x.astype(bf), params["ffn_w1"].astype(bf),
                preferred_element_type=jnp.float32) + params["ffn_b1"]
    h = jnp.maximum(h, 0.0)
    h = jnp.dot(h.astype(bf), params["ffn_w2"].astype(bf),
                preferred_element_type=jnp.float32) + params["ffn_b2"]
    x = _layernorm(x + h, params["ln2_g"], params["ln2_b"])
    return x, att


if __name__ == "__main__":
    # Small shapes consistent with the module's forward (layer_id == 1):
    #   BT = B*T = 2, N = 8 boxes, NFB = 64, NFC = 128, image feature (BT, 512, 4, 4)
    BT, N, NFB, NFC = 2, 8, 64, 128
    D, OH, OW = 512, 4, 4

    key = jax.random.PRNGKey(0)
    k_roi, k_img, k_par = jax.random.split(key, 3)

    roi_feature = jax.random.normal(k_roi, (BT * N, NFB), jnp.float32)       # B*T*N, NFB
    image_feature = jax.random.normal(k_img, (BT, D, OH, OW), jnp.float32)   # B*T, D, OH, OW
    params = init_params(k_par, D=D, NFB=NFB, NFC=NFC)

    fwd = jax.jit(functools.partial(scene_encoded_transformer, N=N))
    context_encoding_roi, att_map = fwd(roi_feature, image_feature, params)
    jax.block_until_ready((context_encoding_roi, att_map))

    assert context_encoding_roi.shape == (BT * N, NFC)
    assert att_map.shape == (BT, N, OH * OW)

    # correctness check against a bf16-consistent pure-JAX reference
    ref_out, ref_att = jax.jit(functools.partial(reference, N=N))(
        roi_feature, image_feature, params)
    jax.block_until_ready((ref_out, ref_att))
    assert jnp.allclose(context_encoding_roi, ref_out, rtol=5e-2, atol=5e-2)
    assert jnp.allclose(att_map, ref_att, rtol=5e-2, atol=5e-2)
    assert bool(jnp.all(jnp.isfinite(context_encoding_roi)))

    print("KERNEL_OK")
</pallas_src>

<mosaic_0001>
module attributes {stable_mosaic.version = 11 : i64} {
  func.func @scene_encoded_transformer_kernel(%arg0: i32, %arg1: memref<2x16x512xbf16, #tpu.memory_space<vmem>>, %arg2: memref<2x8x64xbf16, #tpu.memory_space<vmem>>, %arg3: memref<512x128xbf16, #tpu.memory_space<vmem>>, %arg4: memref<1x128xf32, #tpu.memory_space<vmem>>, %arg5: memref<64x128xbf16, #tpu.memory_space<vmem>>, %arg6: memref<1x128xf32, #tpu.memory_space<vmem>>, %arg7: memref<1x128xf32, #tpu.memory_space<vmem>>, %arg8: memref<1x128xf32, #tpu.memory_space<vmem>>, %arg9: memref<128x128xbf16, #tpu.memory_space<vmem>>, %arg10: memref<1x128xf32, #tpu.memory_space<vmem>>, %arg11: memref<128x128xbf16, #tpu.memory_space<vmem>>, %arg12: memref<1x128xf32, #tpu.memory_space<vmem>>, %arg13: memref<1x128xf32, #tpu.memory_space<vmem>>, %arg14: memref<1x128xf32, #tpu.memory_space<vmem>>, %arg15: memref<2x8x128xf32, #tpu.memory_space<vmem>>, %arg16: memref<2x8x16xf32, #tpu.memory_space<vmem>>) attributes {dimension_semantics = [#tpu.dimension_semantics<parallel>], iteration_bounds = array<i64: 1>, scalar_prefetch = 0 : i64, scratch_operands = 0 : i64, tpu.core_type = #tpu.core_type<tc>, window_params = [{transform_indices = @transform_0, window_bounds = array<i64: 2, 16, 512>}, {transform_indices = @transform_1, window_bounds = array<i64: 2, 8, 64>}, {pipeline_mode = #tpu.pipeline_mode<synchronous>, transform_indices = @transform_2, window_bounds = array<i64: 512, 128>}, {pipeline_mode = #tpu.pipeline_mode<synchronous>, transform_indices = @transform_3, window_bounds = array<i64: 1, 128>}, {pipeline_mode = #tpu.pipeline_mode<synchronous>, transform_indices = @transform_4, window_bounds = array<i64: 64, 128>}, {pipeline_mode = #tpu.pipeline_mode<synchronous>, transform_indices = @transform_5, window_bounds = array<i64: 1, 128>}, {pipeline_mode = #tpu.pipeline_mode<synchronous>, transform_indices = @transform_6, window_bounds = array<i64: 1, 128>}, {pipeline_mode = #tpu.pipeline_mode<synchronous>, transform_indices = @transform_7, window_bounds = array<i64: 1, 128>}, {pipeline_mode = #tpu.pipeline_mode<synchronous>, transform_indices = @transform_8, window_bounds = array<i64: 128, 128>}, {pipeline_mode = #tpu.pipeline_mode<synchronous>, transform_indices = @transform_9, window_bounds = array<i64: 1, 128>}, {pipeline_mode = #tpu.pipeline_mode<synchronous>, transform_indices = @transform_10, window_bounds = array<i64: 128, 128>}, {pipeline_mode = #tpu.pipeline_mode<synchronous>, transform_indices = @transform_11, window_bounds = array<i64: 1, 128>}, {pipeline_mode = #tpu.pipeline_mode<synchronous>, transform_indices = @transform_12, window_bounds = array<i64: 1, 128>}, {pipeline_mode = #tpu.pipeline_mode<synchronous>, transform_indices = @transform_13, window_bounds = array<i64: 1, 128>}, {transform_indices = @transform_14, window_bounds = array<i64: 2, 8, 128>}, {transform_indices = @transform_15, window_bounds = array<i64: 2, 8, 16>}]} {
    %c0 = arith.constant 0 : index
    %c0_0 = arith.constant 0 : index
    %c0_1 = arith.constant 0 : index
    %0 = vector.load %arg1[%c0, %c0_0, %c0_1] : memref<2x16x512xbf16, #tpu.memory_space<vmem>>, vector<2x16x512xbf16>
    %1 = vector.shape_cast %0 : vector<2x16x512xbf16> to vector<32x512xbf16>
    %c0_2 = arith.constant 0 : index
    %c0_3 = arith.constant 0 : index
    %2 = vector.load %arg3[%c0_2, %c0_3] : memref<512x128xbf16, #tpu.memory_space<vmem>>, vector<512x128xbf16>
    %cst = arith.constant dense<0.000000e+00> : vector<32x128xf32>
    %3 = tpu.matmul %1, %2, %cst {dimension_numbers = #tpu.dot_dimension_numbers<[1], [0], [0], [1], [0, 0, 1, 1], [], []>} : vector<32x512xbf16>, vector<512x128xbf16>, vector<32x128xf32> -> vector<32x128xf32>
    %c0_4 = arith.constant 0 : index
    %c0_5 = arith.constant 0 : index
    %4 = vector.load %arg4[%c0_4, %c0_5] : memref<1x128xf32, #tpu.memory_space<vmem>>, vector<1x128xf32>
    %5 = vector.broadcast %4 : vector<1x128xf32> to vector<32x128xf32>
    %6 = arith.addf %3, %5 : vector<32x128xf32>
    %7 = arith.truncf %6 : vector<32x128xf32> to vector<32x128xbf16>
    %8 = vector.shape_cast %7 : vector<32x128xbf16> to vector<2x16x128xbf16>
    %c0_6 = arith.constant 0 : index
    %c0_7 = arith.constant 0 : index
    %c0_8 = arith.constant 0 : index
    %9 = vector.load %arg2[%c0_6, %c0_7, %c0_8] : memref<2x8x64xbf16, #tpu.memory_space<vmem>>, vector<2x8x64xbf16>
    %10 = vector.shape_cast %9 : vector<2x8x64xbf16> to vector<16x64xbf16>
    %c0_9 = arith.constant 0 : index
    %c0_10 = arith.constant 0 : index
    %11 = vector.load %arg5[%c0_9, %c0_10] : memref<64x128xbf16, #tpu.memory_space<vmem>>, vector<64x128xbf16>
    %cst_11 = arith.constant dense<0.000000e+00> : vector<16x128xf32>
    %12 = tpu.matmul %10, %11, %cst_11 {dimension_numbers = #tpu.dot_dimension_numbers<[1], [0], [0], [1], [0, 0, 1, 1], [], []>} : vector<16x64xbf16>, vector<64x128xbf16>, vector<16x128xf32> -> vector<16x128xf32>
    %c0_12 = arith.constant 0 : index
    %c0_13 = arith.constant 0 : index
    %13 = vector.load %arg6[%c0_12, %c0_13] : memref<1x128xf32, #tpu.memory_space<vmem>>, vector<1x128xf32>
    %14 = vector.broadcast %13 : vector<1x128xf32> to vector<16x128xf32>
    %15 = arith.addf %12, %14 : vector<16x128xf32>
    %16 = arith.truncf %15 : vector<16x128xf32> to vector<16x128xbf16>
    %17 = vector.shape_cast %16 : vector<16x128xbf16> to vector<2x8x128xbf16>
    %cst_14 = arith.constant dense<0.000000e+00> : vector<2x8x16xf32>
    %18 = tpu.matmul %17, %8, %cst_14 {dimension_numbers = #tpu.dot_dimension_numbers<[2], [2], [1], [1], [0, 0, 0, 1, 1, 1], [0], [0]>} : vector<2x8x128xbf16>, vector<2x16x128xbf16>, vector<2x8x16xf32> -> vector<2x8x16xf32>
    %cst_15 = arith.constant dense<0xFF800000> : vector<2x8xf32>
    %19 = vector.multi_reduction <maximumf>, %18, %cst_15 [2] : vector<2x8x16xf32> to vector<2x8xf32>
    %20 = vector.shape_cast %19 : vector<2x8xf32> to vector<2x8x1xf32>
    %21 = vector.broadcast %20 : vector<2x8x1xf32> to vector<2x8x16xf32>
    %22 = arith.subf %18, %21 : vector<2x8x16xf32>
    %23 = math.exp %22 : vector<2x8x16xf32>
    %cst_16 = arith.constant dense<0.000000e+00> : vector<2x8xf32>
    %24 = vector.multi_reduction <add>, %23, %cst_16 [2] : vector<2x8x16xf32> to vector<2x8xf32>
    %25 = vector.shape_cast %24 : vector<2x8xf32> to vector<2x8x1xf32>
    %26 = tpu.reciprocal %25 {approx = true} : vector<2x8x1xf32> -> vector<2x8x1xf32>
    %27 = vector.broadcast %26 : vector<2x8x1xf32> to vector<2x8x16xf32>
    %28 = arith.mulf %23, %27 : vector<2x8x16xf32>
    %c0_17 = arith.constant 0 : index
    %c0_18 = arith.constant 0 : index
    %c0_19 = arith.constant 0 : index
    %29 = vector.load %arg16[%c0_17, %c0_18, %c0_19] : memref<2x8x16xf32, #tpu.memory_space<vmem>>, vector<2x8x16xf32>
    tpu.vector_store %arg16[%c0_17, %c0_18, %c0_19], %28 {strides = array<i32>} : memref<2x8x16xf32, #tpu.memory_space<vmem>>, vector<2x8x16xf32>,
    %30 = arith.truncf %28 : vector<2x8x16xf32> to vector<2x8x16xbf16>
    %cst_20 = arith.constant dense<0.000000e+00> : vector<2x8x128xf32>
    %31 = tpu.matmul %30, %8, %cst_20 {dimension_numbers = #tpu.dot_dimension_numbers<[2], [1], [1], [2], [0, 0, 0, 1, 1, 2], [0], [0]>} : vector<2x8x16xbf16>, vector<2x16x128xbf16>, vector<2x8x128xf32> -> vector<2x8x128xf32>
    %32 = vector.shape_cast %31 : vector<2x8x128xf32> to vector<16x128xf32>
    %33 = arith.addf %32, %15 : vector<16x128xf32>
    %c0_21 = arith.constant 0 : index
    %c0_22 = arith.constant 0 : index
    %34 = vector.load %arg7[%c0_21, %c0_22] : memref<1x128xf32, #tpu.memory_space<vmem>>, vector<1x128xf32>
    %c0_23 = arith.constant 0 : index
    %c0_24 = arith.constant 0 : index
    %35 = vector.load %arg8[%c0_23, %c0_24] : memref<1x128xf32, #tpu.memory_space<vmem>>, vector<1x128xf32>
    %cst_25 = arith.constant dense<0.000000e+00> : vector<16xf32>
    %36 = vector.multi_reduction <add>, %33, %cst_25 [1] : vector<16x128xf32> to vector<16xf32>
    %37 = vector.shape_cast %36 : vector<16xf32> to vector<16x1xf32>
    %cst_26 = arith.constant 1.280000e+02 : f32
    %38 = vector.broadcast %cst_26 : f32 to vector<16x1xf32>
    %39 = arith.divf %37, %38 : vector<16x1xf32>
    %40 = vector.broadcast %39 : vector<16x1xf32> to vector<16x128xf32>
    %41 = arith.subf %33, %40 : vector<16x128xf32>
    %42 = arith.mulf %41, %41 : vector<16x128xf32>
    %cst_27 = arith.constant dense<0.000000e+00> : vector<16xf32>
    %43 = vector.multi_reduction <add>, %42, %cst_27 [1] : vector<16x128xf32> to vector<16xf32>
    %44 = vector.shape_cast %43 : vector<16xf32> to vector<16x1xf32>
    %cst_28 = arith.constant 1.280000e+02 : f32
    %45 = vector.broadcast %cst_28 : f32 to vector<16x1xf32>
    %46 = arith.divf %44, %45 : vector<16x1xf32>
    %cst_29 = arith.constant 9.99999974E-6 : f32
    %47 = vector.broadcast %cst_29 : f32 to vector<16x1xf32>
    %48 = arith.addf %46, %47 : vector<16x1xf32>
    %49 = math.rsqrt %48 : vector<16x1xf32>
    %50 = vector.broadcast %49 : vector<16x1xf32> to vector<16x128xf32>
    %51 = arith.mulf %41, %50 : vector<16x128xf32>
    %52 = vector.broadcast %34 : vector<1x128xf32> to vector<16x128xf32>
    %53 = arith.mulf %51, %52 : vector<16x128xf32>
    %54 = vector.broadcast %35 : vector<1x128xf32> to vector<16x128xf32>
    %55 = arith.addf %53, %54 : vector<16x128xf32>
    %56 = arith.truncf %55 : vector<16x128xf32> to vector<16x128xbf16>
    %c0_30 = arith.constant 0 : index
    %c0_31 = arith.constant 0 : index
    %57 = vector.load %arg9[%c0_30, %c0_31] : memref<128x128xbf16, #tpu.memory_space<vmem>>, vector<128x128xbf16>
    %cst_32 = arith.constant dense<0.000000e+00> : vector<16x128xf32>
    %58 = tpu.matmul %56, %57, %cst_32 {dimension_numbers = #tpu.dot_dimension_numbers<[1], [0], [0], [1], [0, 0, 1, 1], [], []>} : vector<16x128xbf16>, vector<128x128xbf16>, vector<16x128xf32> -> vector<16x128xf32>
    %c0_33 = arith.constant 0 : index
    %c0_34 = arith.constant 0 : index
    %59 = vector.load %arg10[%c0_33, %c0_34] : memref<1x128xf32, #tpu.memory_space<vmem>>, vector<1x128xf32>
    %60 = vector.broadcast %59 : vector<1x128xf32> to vector<16x128xf32>
    %61 = arith.addf %58, %60 : vector<16x128xf32>
    %cst_35 = arith.constant 0.000000e+00 : f32
    %62 = vector.broadcast %cst_35 : f32 to vector<16x128xf32>
    %63 = arith.maximumf %61, %62 : vector<16x128xf32>
    %64 = arith.truncf %63 : vector<16x128xf32> to vector<16x128xbf16>
    %c0_36 = arith.constant 0 : index
    %c0_37 = arith.constant 0 : index
    %65 = vector.load %arg11[%c0_36, %c0_37] : memref<128x128xbf16, #tpu.memory_space<vmem>>, vector<128x128xbf16>
    %cst_38 = arith.constant dense<0.000000e+00> : vector<16x128xf32>
    %66 = tpu.matmul %64, %65, %cst_38 {dimension_numbers = #tpu.dot_dimension_numbers<[1], [0], [0], [1], [0, 0, 1, 1], [], []>} : vector<16x128xbf16>, vector<128x128xbf16>, vector<16x128xf32> -> vector<16x128xf32>
    %c0_39 = arith.constant 0 : index
    %c0_40 = arith.constant 0 : index
    %67 = vector.load %arg12[%c0_39, %c0_40] : memref<1x128xf32, #tpu.memory_space<vmem>>, vector<1x128xf32>
    %68 = vector.broadcast %67 : vector<1x128xf32> to vector<16x128xf32>
    %69 = arith.addf %66, %68 : vector<16x128xf32>
    %70 = arith.addf %55, %69 : vector<16x128xf32>
    %c0_41 = arith.constant 0 : index
    %c0_42 = arith.constant 0 : index
    %71 = vector.load %arg13[%c0_41, %c0_42] : memref<1x128xf32, #tpu.memory_space<vmem>>, vector<1x128xf32>
    %c0_43 = arith.constant 0 : index
    %c0_44 = arith.constant 0 : index
    %72 = vector.load %arg14[%c0_43, %c0_44] : memref<1x128xf32, #tpu.memory_space<vmem>>, vector<1x128xf32>
    %cst_45 = arith.constant dense<0.000000e+00> : vector<16xf32>
    %73 = vector.multi_reduction <add>, %70, %cst_45 [1] : vector<16x128xf32> to vector<16xf32>
    %74 = vector.shape_cast %73 : vector<16xf32> to vector<16x1xf32>
    %cst_46 = arith.constant 1.280000e+02 : f32
    %75 = vector.broadcast %cst_46 : f32 to vector<16x1xf32>
    %76 = arith.divf %74, %75 : vector<16x1xf32>
    %77 = vector.broadcast %76 : vector<16x1xf32> to vector<16x128xf32>
    %78 = arith.subf %70, %77 : vector<16x128xf32>
    %79 = arith.mulf %78, %78 : vector<16x128xf32>
    %cst_47 = arith.constant dense<0.000000e+00> : vector<16xf32>
    %80 = vector.multi_reduction <add>, %79, %cst_47 [1] : vector<16x128xf32> to vector<16xf32>
    %81 = vector.shape_cast %80 : vector<16xf32> to vector<16x1xf32>
    %cst_48 = arith.constant 1.280000e+02 : f32
    %82 = vector.broadcast %cst_48 : f32 to vector<16x1xf32>
    %83 = arith.divf %81, %82 : vector<16x1xf32>
    %cst_49 = arith.constant 9.99999974E-6 : f32
    %84 = vector.broadcast %cst_49 : f32 to vector<16x1xf32>
    %85 = arith.addf %83, %84 : vector<16x1xf32>
    %86 = math.rsqrt %85 : vector<16x1xf32>
    %87 = vector.broadcast %86 : vector<16x1xf32> to vector<16x128xf32>
    %88 = arith.mulf %78, %87 : vector<16x128xf32>
    %89 = vector.broadcast %71 : vector<1x128xf32> to vector<16x128xf32>
    %90 = arith.mulf %88, %89 : vector<16x128xf32>
    %91 = vector.broadcast %72 : vector<1x128xf32> to vector<16x128xf32>
    %92 = arith.addf %90, %91 : vector<16x128xf32>
    %93 = vector.shape_cast %92 : vector<16x128xf32> to vector<2x8x128xf32>
    %c0_50 = arith.constant 0 : index
    %c0_51 = arith.constant 0 : index
    %c0_52 = arith.constant 0 : index
    %94 = vector.load %arg15[%c0_50, %c0_51, %c0_52] : memref<2x8x128xf32, #tpu.memory_space<vmem>>, vector<2x8x128xf32>
    tpu.vector_store %arg15[%c0_50, %c0_51, %c0_52], %93 {strides = array<i32>} : memref<2x8x128xf32, #tpu.memory_space<vmem>>, vector<2x8x128xf32>,
    return
  }
  func.func @transform_0(%arg0: i32) -> (i32, i32, i32) {
    %c0_i32 = arith.constant 0 : i32
    %c0_i32_0 = arith.constant 0 : i32
    %c0_i32_1 = arith.constant 0 : i32
    return %arg0, %c0_i32, %c0_i32_0 : i32, i32, i32
  }
  func.func @transform_1(%arg0: i32) -> (i32, i32, i32) {
    %c0_i32 = arith.constant 0 : i32
    %c0_i32_0 = arith.constant 0 : i32
    %c0_i32_1 = arith.constant 0 : i32
    return %arg0, %c0_i32, %c0_i32_0 : i32, i32, i32
  }
  func.func @transform_2(%arg0: i32) -> (i32, i32) {
    %c0_i32 = arith.constant 0 : i32
    %c0_i32_0 = arith.constant 0 : i32
    %c0_i32_1 = arith.constant 0 : i32
    return %c0_i32, %c0_i32_0 : i32, i32
  }
  func.func @transform_3(%arg0: i32) -> (i32, i32) {
    %c0_i32 = arith.constant 0 : i32
    %c0_i32_0 = arith.constant 0 : i32
    %c0_i32_1 = arith.constant 0 : i32
    return %c0_i32, %c0_i32_0 : i32, i32
  }
  func.func @transform_4(%arg0: i32) -> (i32, i32) {
    %c0_i32 = arith.constant 0 : i32
    %c0_i32_0 = arith.constant 0 : i32
    %c0_i32_1 = arith.constant 0 : i32
    return %c0_i32, %c0_i32_0 : i32, i32
  }
  func.func @transform_5(%arg0: i32) -> (i32, i32) {
    %c0_i32 = arith.constant 0 : i32
    %c0_i32_0 = arith.constant 0 : i32
    %c0_i32_1 = arith.constant 0 : i32
    return %c0_i32, %c0_i32_0 : i32, i32
  }
  func.func @transform_6(%arg0: i32) -> (i32, i32) {
    %c0_i32 = arith.constant 0 : i32
    %c0_i32_0 = arith.constant 0 : i32
    %c0_i32_1 = arith.constant 0 : i32
    return %c0_i32, %c0_i32_0 : i32, i32
  }
  func.func @transform_7(%arg0: i32) -> (i32, i32) {
    %c0_i32 = arith.constant 0 : i32
    %c0_i32_0 = arith.constant 0 : i32
    %c0_i32_1 = arith.constant 0 : i32
    return %c0_i32, %c0_i32_0 : i32, i32
  }
  func.func @transform_8(%arg0: i32) -> (i32, i32) {
    %c0_i32 = arith.constant 0 : i32
    %c0_i32_0 = arith.constant 0 : i32
    %c0_i32_1 = arith.constant 0 : i32
    return %c0_i32, %c0_i32_0 : i32, i32
  }
  func.func @transform_9(%arg0: i32) -> (i32, i32) {
    %c0_i32 = arith.constant 0 : i32
    %c0_i32_0 = arith.constant 0 : i32
    %c0_i32_1 = arith.constant 0 : i32
    return %c0_i32, %c0_i32_0 : i32, i32
  }
  func.func @transform_10(%arg0: i32) -> (i32, i32) {
    %c0_i32 = arith.constant 0 : i32
    %c0_i32_0 = arith.constant 0 : i32
    %c0_i32_1 = arith.constant 0 : i32
    return %c0_i32, %c0_i32_0 : i32, i32
  }
  func.func @transform_11(%arg0: i32) -> (i32, i32) {
    %c0_i32 = arith.constant 0 : i32
    %c0_i32_0 = arith.constant 0 : i32
    %c0_i32_1 = arith.constant 0 : i32
    return %c0_i32, %c0_i32_0 : i32, i32
  }
  func.func @transform_12(%arg0: i32) -> (i32, i32) {
    %c0_i32 = arith.constant 0 : i32
    %c0_i32_0 = arith.constant 0 : i32
    %c0_i32_1 = arith.constant 0 : i32
    return %c0_i32, %c0_i32_0 : i32, i32
  }
  func.func @transform_13(%arg0: i32) -> (i32, i32) {
    %c0_i32 = arith.constant 0 : i32
    %c0_i32_0 = arith.constant 0 : i32
    %c0_i32_1 = arith.constant 0 : i32
    return %c0_i32, %c0_i32_0 : i32, i32
  }
  func.func @transform_14(%arg0: i32) -> (i32, i32, i32) {
    %c0_i32 = arith.constant 0 : i32
    %c0_i32_0 = arith.constant 0 : i32
    %c0_i32_1 = arith.constant 0 : i32
    return %arg0, %c0_i32, %c0_i32_0 : i32, i32, i32
  }
  func.func @transform_15(%arg0: i32) -> (i32, i32, i32) {
    %c0_i32 = arith.constant 0 : i32
    %c0_i32_0 = arith.constant 0 : i32
    %c0_i32_1 = arith.constant 0 : i32
    return %arg0, %c0_i32, %c0_i32_0 : i32, i32, i32
  }
}

</mosaic_0001>

<llo_original>
// kernel: scene_encoded_transformer.1
$region0: #{scene_encoded_transformer.1}
  #allocation0 [shape = 'u32[]', space=smem, size = 0x4, offset = 0x4, fixed_abs, tag = 'smem constant byte address 0x4 - core index']
  #allocation1 [shape = 'u32[144,128]{1,0:T(1,128)}', space=vmem, size = 0x12000, scoped, tag = 'internal scratch']
  %s0 = inlined_call_operand.vmem [shape: bf16[2,16,512], index: 0, kind: input, shape index: {}]
  %s1 = inlined_call_operand.vmem [shape: bf16[2,8,64], index: 1, kind: input, shape index: {}]
  %s2 = inlined_call_operand.vmem [shape: bf16[512,128], index: 2, kind: input, shape index: {}]
  %s3 = inlined_call_operand.vmem [shape: f32[1,128], index: 3, kind: input, shape index: {}]
  %s4 = inlined_call_operand.vmem [shape: bf16[64,128], index: 4, kind: input, shape index: {}]
  %s5 = inlined_call_operand.vmem [shape: f32[1,128], index: 5, kind: input, shape index: {}]
  %s6 = inlined_call_operand.vmem [shape: f32[1,128], index: 6, kind: input, shape index: {}]
  %s7 = inlined_call_operand.vmem [shape: f32[1,128], index: 7, kind: input, shape index: {}]
  %s8 = inlined_call_operand.vmem [shape: bf16[128,128], index: 8, kind: input, shape index: {}]
  %s9 = inlined_call_operand.vmem [shape: f32[1,128], index: 9, kind: input, shape index: {}]
  %s10 = inlined_call_operand.vmem [shape: bf16[128,128], index: 10, kind: input, shape index: {}]
  %s11 = inlined_call_operand.vmem [shape: f32[1,128], index: 11, kind: input, shape index: {}]
  %s12 = inlined_call_operand.vmem [shape: f32[1,128], index: 12, kind: input, shape index: {}]
  %s13 = inlined_call_operand.vmem [shape: f32[1,128], index: 13, kind: input, shape index: {}]
  %s14 = inlined_call_operand.hbm [shape: f32[2,8,128], index: 14, kind: output, shape index: {0}]
  %s15 = inlined_call_operand.hbm [shape: f32[2,8,16], index: 15, kind: output, shape index: {1}]
  %16 = xla_tuple %s14, %s15
  %s17 = sld [smem:[#allocation0]]
  $region74: #{scene_encoded_transformer.1} parent=0
    _
  %s19 = ssub.s32 1, %s17
  %s20 = scalar_select 0, %s19, %s17
  $region1: #{scene_encoded_transformer.1} parent=0
    #allocation2 [shape = 'u8[8192]{0}', space=vmem, size = 0x2000, scoped, tag = 'output window, operand 0, single buffered']
    #allocation3 [shape = 's32[1]{0}', space=sflag, size = 0x4, scoped, tag = 'scoped memory for scene_encoded_transformer.1']
    #allocation4 [shape = 'u8[8192]{0}', space=vmem, size = 0x2000, scoped, tag = 'output window, operand 1, single buffered']
    #allocation5 [shape = 's32[1]{0}', space=sflag, size = 0x4, scoped, tag = 'scoped memory for scene_encoded_transformer.1']
    %21 = vsyncpa [#allocation3], 0
    %22 = vsyncpa [#allocation5], 0
    // Predicated region
    $region2: #{scene_encoded_transformer.1} parent=1 // pred_check
      _
    $region3: #{scene_encoded_transformer.1} parent=1 // pred_check_branch
      %24 = sbr.rel (0) target = $region5
    $region4: #{scene_encoded_transformer.1} parent=1 // pred_region
      _
    $region5: #{scene_encoded_transformer.1} parent=1 // pred_fallthru
      _
    // Predicated region
    $region6: #{scene_encoded_transformer.1} parent=1 // pred_check
      _
    $region7: #{scene_encoded_transformer.1} parent=1 // pred_check_branch
      %26 = sbr.rel (0) target = $region9
    $region8: #{scene_encoded_transformer.1} parent=1 // pred_region
      _
    $region9: #{scene_encoded_transformer.1} parent=1 // pred_fallthru
      _
    // Predicated region
    $region10: #{scene_encoded_transformer.1} parent=1 // pred_check
      _
    $region11: #{scene_encoded_transformer.1} parent=1 // pred_check_branch
      %28 = sbr.rel (0) target = $region13
    $region12: #{scene_encoded_transformer.1} parent=1 // pred_region
      _
    $region13: #{scene_encoded_transformer.1} parent=1 // pred_fallthru
      _
    // Predicated region
    $region14: #{scene_encoded_transformer.1} parent=1 // pred_check
      _
    $region15: #{scene_encoded_transformer.1} parent=1 // pred_check_branch
      %30 = sbr.rel (0) target = $region17
    $region16: #{scene_encoded_transformer.1} parent=1 // pred_region
      _
    $region17: #{scene_encoded_transformer.1} parent=1 // pred_fallthru
      _
    // Predicated region
    $region18: #{scene_encoded_transformer.1} parent=1 // pred_check
      _
    $region19: #{scene_encoded_transformer.1} parent=1 // pred_check_branch
      %32 = sbr.rel (0) target = $region21
    $region20: #{scene_encoded_transformer.1} parent=1 // pred_region
      _
    $region21: #{scene_encoded_transformer.1} parent=1 // pred_fallthru
      _
    // Predicated region
    $region22: #{scene_encoded_transformer.1} parent=1 // pred_check
      _
    $region23: #{scene_encoded_transformer.1} parent=1 // pred_check_branch
      %34 = sbr.rel (0) target = $region25
    $region24: #{scene_encoded_transformer.1} parent=1 // pred_region
      _
    $region25: #{scene_encoded_transformer.1} parent=1 // pred_fallthru
      _
    // Predicated region
    $region26: #{scene_encoded_transformer.1} parent=1 // pred_check
      _
    $region27: #{scene_encoded_transformer.1} parent=1 // pred_check_branch
      %36 = sbr.rel (0) target = $region29
    $region28: #{scene_encoded_transformer.1} parent=1 // pred_region
      _
    $region29: #{scene_encoded_transformer.1} parent=1 // pred_fallthru
      _
    // Predicated region
    $region30: #{scene_encoded_transformer.1} parent=1 // pred_check
      _
    $region31: #{scene_encoded_transformer.1} parent=1 // pred_check_branch
      %38 = sbr.rel (0) target = $region33
    $region32: #{scene_encoded_transformer.1} parent=1 // pred_region
      _
    $region33: #{scene_encoded_transformer.1} parent=1 // pred_fallthru
      _
    // Predicated region
    $region34: #{scene_encoded_transformer.1} parent=1 // pred_check
      _
    $region35: #{scene_encoded_transformer.1} parent=1 // pred_check_branch
      %40 = sbr.rel (0) target = $region37
    $region36: #{scene_encoded_transformer.1} parent=1 // pred_region
      _
    $region37: #{scene_encoded_transformer.1} parent=1 // pred_fallthru
      _
    // Predicated region
    $region38: #{scene_encoded_transformer.1} parent=1 // pred_check
      _
    $region39: #{scene_encoded_transformer.1} parent=1 // pred_check_branch
      %42 = sbr.rel (0) target = $region41
    $region40: #{scene_encoded_transformer.1} parent=1 // pred_region
      _
    $region41: #{scene_encoded_transformer.1} parent=1 // pred_fallthru
      _
    // Predicated region
    $region42: #{scene_encoded_transformer.1} parent=1 // pred_check
      _
    $region43: #{scene_encoded_transformer.1} parent=1 // pred_check_branch
      %44 = sbr.rel (0) target = $region45
    $region44: #{scene_encoded_transformer.1} parent=1 // pred_region
      _
    $region45: #{scene_encoded_transformer.1} parent=1 // pred_fallthru
      _
    // Predicated region
    $region46: #{scene_encoded_transformer.1} parent=1 // pred_check
      _
    $region47: #{scene_encoded_transformer.1} parent=1 // pred_check_branch
      %46 = sbr.rel (0) target = $region49
    $region48: #{scene_encoded_transformer.1} parent=1 // pred_region
      _
    $region49: #{scene_encoded_transformer.1} parent=1 // pred_fallthru
      _
    // Predicated region
    $region50: #{scene_encoded_transformer.1} parent=1 // pred_check
      _
    $region51: #{scene_encoded_transformer.1} parent=1 // pred_check_branch
      %48 = sbr.rel (0) target = $region53
    $region52: #{scene_encoded_transformer.1} parent=1 // pred_region
      _
    $region53: #{scene_encoded_transformer.1} parent=1 // pred_fallthru
      _
    // Predicated region
    $region54: #{scene_encoded_transformer.1} parent=1 // pred_check
      _
    $region55: #{scene_encoded_transformer.1} parent=1 // pred_check_branch
      %50 = sbr.rel (0) target = $region57
    $region56: #{scene_encoded_transformer.1} parent=1 // pred_region
      _
    $region57: #{scene_encoded_transformer.1} parent=1 // pred_fallthru
      _
    %v52 = vld [vmem:[%s0] sm:$0xff]
    %v53 = vld [vmem:[%s0 + $0x8] sm:$0xff]
    %v54 = vld [vmem:[%s0 + $0x10] sm:$0xff]
    %v55 = vld [vmem:[%s0 + $0x18] sm:$0xff]
    %v56 = vld [vmem:[%s0 + $0x20] sm:$0xff]
    %v57 = vld [vmem:[%s0 + $0x28] sm:$0xff]
    %v58 = vld [vmem:[%s0 + $0x30] sm:$0xff]
    %v59 = vld [vmem:[%s0 + $0x38] sm:$0xff]
    %v60 = vld [vmem:[%s2] sm:$0xf]
    %v61 = vld [vmem:[%s2 + $0x4] sm:$0xf]
    %v62 = vld [vmem:[%s2 + $0x8] sm:$0xf]
    %v63 = vld [vmem:[%s2 + $0xc] sm:$0xf]
    %v64 = vld [vmem:[%s2 + $0x10] sm:$0xf]
    %v65 = vld [vmem:[%s2 + $0x14] sm:$0xf]
    %v66 = vld [vmem:[%s2 + $0x18] sm:$0xf]
    %v67 = vld [vmem:[%s2 + $0x1c] sm:$0xf]
    %v68 = vld [vmem:[%s2 + $0x20] sm:$0xf]
    %v69 = vld [vmem:[%s2 + $0x24] sm:$0xf]
    %v70 = vld [vmem:[%s2 + $0x28] sm:$0xf]
    %v71 = vld [vmem:[%s2 + $0x2c] sm:$0xf]
    %v72 = vld [vmem:[%s2 + $0x30] sm:$0xf]
    %v73 = vld [vmem:[%s2 + $0x34] sm:$0xf]
    %v74 = vld [vmem:[%s2 + $0x38] sm:$0xf]
    %v75 = vld [vmem:[%s2 + $0x3c] sm:$0xf]
    %v76 = vld [vmem:[%s2 + $0x40] sm:$0xf]
    %v77 = vld [vmem:[%s2 + $0x44] sm:$0xf]
    %v78 = vld [vmem:[%s2 + $0x48] sm:$0xf]
    %v79 = vld [vmem:[%s2 + $0x4c] sm:$0xf]
    %v80 = vld [vmem:[%s2 + $0x50] sm:$0xf]
    %v81 = vld [vmem:[%s2 + $0x54] sm:$0xf]
    %v82 = vld [vmem:[%s2 + $0x58] sm:$0xf]
    %v83 = vld [vmem:[%s2 + $0x5c] sm:$0xf]
    %v84 = vld [vmem:[%s2 + $0x60] sm:$0xf]
    %v85 = vld [vmem:[%s2 + $0x64] sm:$0xf]
    %v86 = vld [vmem:[%s2 + $0x68] sm:$0xf]
    %v87 = vld [vmem:[%s2 + $0x6c] sm:$0xf]
    %v88 = vld [vmem:[%s2 + $0x70] sm:$0xf]
    %v89 = vld [vmem:[%s2 + $0x74] sm:$0xf]
    %v90 = vld [vmem:[%s2 + $0x78] sm:$0xf]
    %v91 = vld [vmem:[%s2 + $0x7c] sm:$0xf]
    %v92 = vld [vmem:[%s2 + $0x80] sm:$0xf]
    %v93 = vld [vmem:[%s2 + $0x84] sm:$0xf]
    %v94 = vld [vmem:[%s2 + $0x88] sm:$0xf]
    %v95 = vld [vmem:[%s2 + $0x8c] sm:$0xf]
    %v96 = vld [vmem:[%s2 + $0x90] sm:$0xf]
    %v97 = vld [vmem:[%s2 + $0x94] sm:$0xf]
    %v98 = vld [vmem:[%s2 + $0x98] sm:$0xf]
    %v99 = vld [vmem:[%s2 + $0x9c] sm:$0xf]
    %v100 = vld [vmem:[%s2 + $0xa0] sm:$0xf]
    %v101 = vld [vmem:[%s2 + $0xa4] sm:$0xf]
    %v102 = vld [vmem:[%s2 + $0xa8] sm:$0xf]
    %v103 = vld [vmem:[%s2 + $0xac] sm:$0xf]
    %v104 = vld [vmem:[%s2 + $0xb0] sm:$0xf]
    %v105 = vld [vmem:[%s2 + $0xb4] sm:$0xf]
    %v106 = vld [vmem:[%s2 + $0xb8] sm:$0xf]
    %v107 = vld [vmem:[%s2 + $0xbc] sm:$0xf]
    %v108 = vld [vmem:[%s2 + $0xc0] sm:$0xf]
    %v109 = vld [vmem:[%s2 + $0xc4] sm:$0xf]
    %v110 = vld [vmem:[%s2 + $0xc8] sm:$0xf]
    %v111 = vld [vmem:[%s2 + $0xcc] sm:$0xf]
    %v112 = vld [vmem:[%s2 + $0xd0] sm:$0xf]
    %v113 = vld [vmem:[%s2 + $0xd4] sm:$0xf]
    %v114 = vld [vmem:[%s2 + $0xd8] sm:$0xf]
    %v115 = vld [vmem:[%s2 + $0xdc] sm:$0xf]
    %v116 = vld [vmem:[%s2 + $0xe0] sm:$0xf]
    %v117 = vld [vmem:[%s2 + $0xe4] sm:$0xf]
    %v118 = vld [vmem:[%s2 + $0xe8] sm:$0xf]
    %v119 = vld [vmem:[%s2 + $0xec] sm:$0xf]
    %v120 = vld [vmem:[%s2 + $0xf0] sm:$0xf]
    %v121 = vld [vmem:[%s2 + $0xf4] sm:$0xf]
    %v122 = vld [vmem:[%s2 + $0xf8] sm:$0xf]
    %v123 = vld [vmem:[%s2 + $0xfc] sm:$0xf]
    %v124 = vld [vmem:[%s3] sm:$0x1]
    %v126 = vlaneseq
    %v127 = vshrl.u32 %v126, 7
    %v128 = vsub.s32 0, %v127
    %v129 = vrot.slane %v124, %v128
    %v139 = vunpack.c.l.b16 %v52
    %v140 = vunpack.c.h.b16 %v52
    %v141 = vunpack.c.l.b16 %v53
    %v142 = vunpack.c.h.b16 %v53
    %v143 = vunpack.c.l.b16 %v54
    %v144 = vunpack.c.h.b16 %v54
    %v145 = vunpack.c.l.b16 %v55
    %v146 = vunpack.c.h.b16 %v55
    %v147 = vunpack.c.l.b16 %v56
    %v148 = vunpack.c.h.b16 %v56
    %v149 = vunpack.c.l.b16 %v57
    %v150 = vunpack.c.h.b16 %v57
    %v151 = vunpack.c.l.b16 %v58
    %v152 = vunpack.c.h.b16 %v58
    %v153 = vunpack.c.l.b16 %v59
    %v154 = vunpack.c.h.b16 %v59
    %v155 = vpack.c.b16 %v143, %v139
    %v156 = vpack.c.b16 %v144, %v140
    %v157 = vpack.c.b16 %v145, %v141
    %v158 = vpack.c.b16 %v146, %v142
    %v159 = vpack.c.b16 %v151, %v147
    %v160 = vpack.c.b16 %v152, %v148
    %v161 = vpack.c.b16 %v153, %v149
    %v162 = vpack.c.b16 %v154, %v150
    %v235 = vunpack.c.l.b16 %v60
    %v236 = vunpack.c.l.b16 %v61
    %v237 = vunpack.c.l.b16 %v62
    %v238 = vunpack.c.l.b16 %v63
    %v239 = vunpack.c.l.b16 %v64
    %v240 = vunpack.c.l.b16 %v65
    %v241 = vunpack.c.l.b16 %v66
    %v242 = vunpack.c.l.b16 %v67
    %v243 = vunpack.c.l.b16 %v68
    %v244 = vunpack.c.l.b16 %v69
    %v245 = vunpack.c.l.b16 %v70
    %v246 = vunpack.c.l.b16 %v71
    %v247 = vunpack.c.l.b16 %v72
    %v248 = vunpack.c.l.b16 %v73
    %v249 = vunpack.c.l.b16 %v74
    %v250 = vunpack.c.l.b16 %v75
    %v251 = vunpack.c.l.b16 %v76
    %v252 = vunpack.c.l.b16 %v77
    %v253 = vunpack.c.l.b16 %v78
    %v254 = vunpack.c.l.b16 %v79
    %v255 = vunpack.c.l.b16 %v80
    %v256 = vunpack.c.l.b16 %v81
    %v257 = vunpack.c.l.b16 %v82
    %v258 = vunpack.c.l.b16 %v83
    %v259 = vunpack.c.l.b16 %v84
    %v260 = vunpack.c.l.b16 %v85
    %v261 = vunpack.c.l.b16 %v86
    %v262 = vunpack.c.l.b16 %v87
    %v263 = vunpack.c.l.b16 %v88
    %v264 = vunpack.c.l.b16 %v89
    %v265 = vunpack.c.l.b16 %v90
    %v266 = vunpack.c.l.b16 %v91
    %v267 = vunpack.c.l.b16 %v92
    %v268 = vunpack.c.l.b16 %v93
    %v269 = vunpack.c.l.b16 %v94
    %v270 = vunpack.c.l.b16 %v95
    %v271 = vunpack.c.l.b16 %v96
    %v272 = vunpack.c.l.b16 %v97
    %v273 = vunpack.c.l.b16 %v98
    %v274 = vunpack.c.l.b16 %v99
    %v275 = vunpack.c.l.b16 %v100
    %v276 = vunpack.c.l.b16 %v101
    %v277 = vunpack.c.l.b16 %v102
    %v278 = vunpack.c.l.b16 %v103
    %v279 = vunpack.c.l.b16 %v104
    %v280 = vunpack.c.l.b16 %v105
    %v281 = vunpack.c.l.b16 %v106
    %v282 = vunpack.c.l.b16 %v107
    %v283 = vunpack.c.l.b16 %v108
    %v284 = vunpack.c.l.b16 %v109
    %v285 = vunpack.c.l.b16 %v110
    %v286 = vunpack.c.l.b16 %v111
    %v287 = vunpack.c.l.b16 %v112
    %v288 = vunpack.c.l.b16 %v113
    %v289 = vunpack.c.l.b16 %v114
    %v290 = vunpack.c.l.b16 %v115
    %v291 = vunpack.c.l.b16 %v116
    %v292 = vunpack.c.l.b16 %v117
    %v293 = vunpack.c.l.b16 %v118
    %v294 = vunpack.c.l.b16 %v119
    %v295 = vunpack.c.l.b16 %v120
    %v296 = vunpack.c.l.b16 %v121
    %v297 = vunpack.c.l.b16 %v122
    %v298 = vunpack.c.l.b16 %v123
    %v299 = vpack.c.b16 %v236, %v235
    %v300 = vpack.c.b16 %v238, %v237
    %v301 = vpack.c.b16 %v240, %v239
    %v302 = vpack.c.b16 %v242, %v241
    %v303 = vpack.c.b16 %v244, %v243
    %v304 = vpack.c.b16 %v246, %v245
    %v305 = vpack.c.b16 %v248, %v247
    %v306 = vpack.c.b16 %v250, %v249
    %v307 = vpack.c.b16 %v252, %v251
    %v308 = vpack.c.b16 %v254, %v253
    %v309 = vpack.c.b16 %v256, %v255
    %v310 = vpack.c.b16 %v258, %v257
    %v311 = vpack.c.b16 %v260, %v259
    %v312 = vpack.c.b16 %v262, %v261
    %v313 = vpack.c.b16 %v264, %v263
    %v314 = vpack.c.b16 %v266, %v265
    %v315 = vpack.c.b16 %v268, %v267
    %v316 = vpack.c.b16 %v270, %v269
    %v317 = vpack.c.b16 %v272, %v271
    %v318 = vpack.c.b16 %v274, %v273
    %v319 = vpack.c.b16 %v276, %v275
    %v320 = vpack.c.b16 %v278, %v277
    %v321 = vpack.c.b16 %v280, %v279
    %v322 = vpack.c.b16 %v282, %v281
    %v323 = vpack.c.b16 %v284, %v283
    %v324 = vpack.c.b16 %v286, %v285
    %v325 = vpack.c.b16 %v288, %v287
    %v326 = vpack.c.b16 %v290, %v289
    %v327 = vpack.c.b16 %v292, %v291
    %v328 = vpack.c.b16 %v294, %v293
    %v329 = vpack.c.b16 %v296, %v295
    %v330 = vpack.c.b16 %v298, %v297
    %363 = vmatprep.subr.bf16.mxu0 0
    %364 = vmatpush1.bf16.msra.mxu0 %v299
    %365 = vmatprep.subr.bf16.mxu0 0
    %366 = vmatpush1.bf16.msra.mxu0 %v300
    %367 = vmatprep.subr.bf16.mxu0 0
    %368 = vmatpush1.bf16.msra.mxu0 %v301
    %369 = vmatprep.subr.bf16.mxu0 0
    %370 = vmatpush1.bf16.msra.mxu0 %v302
    %371 = vmatprep.subr.bf16.mxu0 0
    %372 = vmatpush1.bf16.msra.mxu0 %v303
    %373 = vmatprep.subr.bf16.mxu0 0
    %374 = vmatpush1.bf16.msra.mxu0 %v304
    %375 = vmatprep.subr.bf16.mxu0 0
    %376 = vmatpush1.bf16.msra.mxu0 %v305
    %377 = vmatprep.subr.bf16.mxu0 0
    %378 = vmatpush1.bf16.msra.mxu0 %v306
    %379 = vmatprep.subr.bf16.mxu0 0
    %380 = vmatpush1.bf16.msra.mxu0 %v307
    %381 = vmatprep.subr.bf16.mxu0 0
    %382 = vmatpush1.bf16.msra.mxu0 %v308
    %383 = vmatprep.subr.bf16.mxu0 0
    %384 = vmatpush1.bf16.msra.mxu0 %v309
    %385 = vmatprep.subr.bf16.mxu0 0
    %386 = vmatpush1.bf16.msra.mxu0 %v310
    %387 = vmatprep.subr.bf16.mxu0 0
    %388 = vmatpush1.bf16.msra.mxu0 %v311
    %389 = vmatprep.subr.bf16.mxu0 0
    %390 = vmatpush1.bf16.msra.mxu0 %v312
    %391 = vmatprep.subr.bf16.mxu0 0
    %392 = vmatpush1.bf16.msra.mxu0 %v313
    %393 = vmatprep.subr.bf16.mxu0 0
    %394 = vmatpush1.bf16.msra.mxu0 %v314
    %395 = vmatprep.mubr.bf16.mxu0 %v156
    %396 = vmatmul.mubr.bf16.gmra.mrb[0].mxu0 %v155
    %v397 = vpop.f32.mrb[0].mxu0
    %v398 = vadd.f32 %v129, %v397
    %v399 = vpop.f32.mrb[0].mxu0
    %v400 = vpop.f32.mrb[0].mxu0
    %v401 = vadd.f32 %v129, %v400
    %v402 = vpop.f32.mrb[0].mxu0
    %403 = vmatprep.mubr.bf16.mxu0 %v160
    %404 = vmatmul.mubr.bf16.gmra.mrb[0].mxu0 %v159
    %v405 = vpop.f32.mrb[0].mxu0
    %v406 = vadd.f32 %v129, %v405
    %v407 = vpop.f32.mrb[0].mxu0
    %v408 = vpop.f32.mrb[0].mxu0
    %v409 = vadd.f32 %v129, %v408
    %v410 = vpop.f32.mrb[0].mxu0
    %411 = vdwg.mxu0
    %412 = vmatprep.subr.bf16.mxu0 0
    %413 = vmatpush1.bf16.msra.mxu0 %v315
    %414 = vmatprep.subr.bf16.mxu0 0
    %415 = vmatpush1.bf16.msra.mxu0 %v316
    %416 = vmatprep.subr.bf16.mxu0 0
    %417 = vmatpush1.bf16.msra.mxu0 %v317
    %418 = vmatprep.subr.bf16.mxu0 0
    %419 = vmatpush1.bf16.msra.mxu0 %v318
    %420 = vmatprep.subr.bf16.mxu0 0
    %421 = vmatpush1.bf16.msra.mxu0 %v319
    %422 = vmatprep.subr.bf16.mxu0 0
    %423 = vmatpush1.bf16.msra.mxu0 %v320
    %424 = vmatprep.subr.bf16.mxu0 0
    %425 = vmatpush1.bf16.msra.mxu0 %v321
    %426 = vmatprep.subr.bf16.mxu0 0
    %427 = vmatpush1.bf16.msra.mxu0 %v322
    %428 = vmatprep.subr.bf16.mxu0 0
    %429 = vmatpush1.bf16.msra.mxu0 %v323
    %430 = vmatprep.subr.bf16.mxu0 0
    %431 = vmatpush1.bf16.msra.mxu0 %v324
    %432 = vmatprep.subr.bf16.mxu0 0
    %433 = vmatpush1.bf16.msra.mxu0 %v325
    %434 = vmatprep.subr.bf16.mxu0 0
    %435 = vmatpush1.bf16.msra.mxu0 %v326
    %436 = vmatprep.subr.bf16.mxu0 0
    %437 = vmatpush1.bf16.msra.mxu0 %v327
    %438 = vmatprep.subr.bf16.mxu0 0
    %439 = vmatpush1.bf16.msra.mxu0 %v328
    %440 = vmatprep.subr.bf16.mxu0 0
    %441 = vmatpush1.bf16.msra.mxu0 %v329
    %442 = vmatprep.subr.bf16.mxu0 0
    %443 = vmatpush1.bf16.msra.mxu0 %v330
    %444 = vmatprep.mubr.bf16.mxu0 %v158
    %445 = vmatmul.mubr.bf16.gmra.mrb[0].mxu0 %v157
    %v446 = vpop.f32.mrb[0].mxu0
    %v447 = vadd.f32 %v398, %v446
    %v448 = vpop.f32.mrb[0].mxu0
    %v449 = vpop.f32.mrb[0].mxu0
    %v450 = vadd.f32 %v401, %v449
    %v451 = vpop.f32.mrb[0].mxu0
    %452 = vmatprep.mubr.bf16.mxu0 %v162
    %453 = vmatmul.mubr.bf16.gmra.mrb[0].mxu0 %v161
    %v454 = vpop.f32.mrb[0].mxu0
    %v455 = vadd.f32 %v406, %v454
    %v456 = vpop.f32.mrb[0].mxu0
    %v457 = vpop.f32.mrb[0].mxu0
    %v458 = vadd.f32 %v409, %v457
    %v459 = vpop.f32.mrb[0].mxu0
    %460 = vdwg.mxu0
    %v461 = vpack.c.bf16 %v450, %v447
    %v462 = vpack.c.bf16 %v458, %v455
    %v463 = vld [vmem:[%s1] sm:$0xf]
    %v464 = vld [vmem:[%s1 + $0x4] sm:$0xf]
    %v465 = vld [vmem:[%s4] sm:$0xf]
    %v466 = vld [vmem:[%s4 + $0x4] sm:$0xf]
    %v467 = vld [vmem:[%s4 + $0x8] sm:$0xf]
    %v468 = vld [vmem:[%s4 + $0xc] sm:$0xf]
    %v469 = vld [vmem:[%s4 + $0x10] sm:$0xf]
    %v470 = vld [vmem:[%s4 + $0x14] sm:$0xf]
    %v471 = vld [vmem:[%s4 + $0x18] sm:$0xf]
    %v472 = vld [vmem:[%s4 + $0x1c] sm:$0xf]
    %v473 = vld [vmem:[%s5] sm:$0x1]
    %v475 = vlaneseq
    %v476 = vshrl.u32 %v475, 7
    %v477 = vsub.s32 0, %v476
    %v478 = vrot.slane %v473, %v477
    %v482 = vunpack.c.l.b16 %v463
    %v483 = vunpack.c.l.b16 %v464
    %v484 = vpack.c.b16 %v483, %v482
    %v493 = vunpack.c.l.b16 %v465
    %v494 = vunpack.c.l.b16 %v466
    %v495 = vunpack.c.l.b16 %v467
    %v496 = vunpack.c.l.b16 %v468
    %v497 = vunpack.c.l.b16 %v469
    %v498 = vunpack.c.l.b16 %v470
    %v499 = vunpack.c.l.b16 %v471
    %v500 = vunpack.c.l.b16 %v472
    %v501 = vpack.c.b16 %v494, %v493
    %v502 = vpack.c.b16 %v496, %v495
    %v503 = vpack.c.b16 %v498, %v497
    %v504 = vpack.c.b16 %v500, %v499
    %vm509 = vcmask 523264
    %v511 = vsel %vm509, %v484, 0
    %513 = vmatprep.subr.bf16.mxu0 0
    %514 = vmatpush1.bf16.msra.mxu0 %v501
    %515 = vmatprep.subr.bf16.mxu0 0
    %516 = vmatpush1.bf16.msra.mxu0 %v502
    %517 = vmatprep.subr.bf16.mxu0 0
    %518 = vmatpush1.bf16.msra.mxu0 %v503
    %519 = vmatprep.subr.bf16.mxu0 0
    %520 = vmatpush1.bf16.msra.mxu0 %v504
    %521 = vmatprep.subr.bf16.mxu0 0
    %522 = vmatpush1.bf16.msra.mxu0 0
    %523 = vmatprep.subr.bf16.mxu0 0
    %524 = vmatpush1.bf16.msra.mxu0 0
    %525 = vmatprep.subr.bf16.mxu0 0
    %526 = vmatpush1.bf16.msra.mxu0 0
    %527 = vmatprep.subr.bf16.mxu0 0
    %528 = vmatpush1.bf16.msra.mxu0 0
    %529 = vmatprep.subr.bf16.mxu0 0
    %530 = vmatpush1.bf16.msra.mxu0 0
    %531 = vmatprep.subr.bf16.mxu0 0
    %532 = vmatpush1.bf16.msra.mxu0 0
    %533 = vmatprep.subr.bf16.mxu0 0
    %534 = vmatpush1.bf16.msra.mxu0 0
    %535 = vmatprep.subr.bf16.mxu0 0
    %536 = vmatpush1.bf16.msra.mxu0 0
    %537 = vmatprep.subr.bf16.mxu0 0
    %538 = vmatpush1.bf16.msra.mxu0 0
    %539 = vmatprep.subr.bf16.mxu0 0
    %540 = vmatpush1.bf16.msra.mxu0 0
    %541 = vmatprep.subr.bf16.mxu0 0
    %542 = vmatpush1.bf16.msra.mxu0 0
    %543 = vmatprep.subr.bf16.mxu0 0
    %544 = vmatpush1.bf16.msra.mxu0 0
    %545 = vmatprep.mubr.bf16.mxu0 0
    %546 = vmatmul.mubr.bf16.gmra.mrb[0].mxu0 %v511
    %v547 = vpop.f32.mrb[0].mxu0
    %v548 = vadd.f32 %v478, %v547
    %v549 = vpop.f32.mrb[0].mxu0
    %v550 = vpop.f32.mrb[0].mxu0
    %v551 = vadd.f32 %v478, %v550
    %v552 = vpop.f32.mrb[0].mxu0
    %553 = vdwg.mxu0
    %v554 = vpack.c.bf16 %v551, %v548
    %v556 = vunpack.c.l.b16 %v554
    %v557 = vunpack.c.h.b16 %v554
    %v558 = vpack.c.b16 %v556, %v556
    %v559 = vpack.c.b16 %v557, %v557
    %562 = vmatprep.subr.bf16.mxu0 0
    %563 = vmatpush1.bf16.xpose.msra.mxu0 %v461
    %564 = vmatprep.subr.bf16.mxu0 0
    %565 = vmatpush1.bf16.xpose.msra.mxu0 0
    %566 = vmatprep.subr.bf16.mxu0 0
    %567 = vmatpush1.bf16.xpose.msra.mxu0 0
    %568 = vmatprep.subr.bf16.mxu0 0
    %569 = vmatpush1.bf16.xpose.msra.mxu0 0
    %570 = vmatprep.subr.bf16.mxu0 0
    %571 = vmatpush1.bf16.xpose.msra.mxu0 0
    %572 = vmatprep.subr.bf16.mxu0 0
    %573 = vmatpush1.bf16.xpose.msra.mxu0 0
    %574 = vmatprep.subr.bf16.mxu0 0
    %575 = vmatpush1.bf16.xpose.msra.mxu0 0
    %576 = vmatprep.subr.bf16.mxu0 0
    %577 = vmatpush1.bf16.xpose.msra.mxu0 0
    %578 = vmatprep.subr.bf16.mxu0 0
    %579 = vmatpush1.bf16.xpose.msra.mxu0 0
    %580 = vmatprep.subr.bf16.mxu0 0
    %581 = vmatpush1.bf16.xpose.msra.mxu0 0
    %582 = vmatprep.subr.bf16.mxu0 0
    %583 = vmatpush1.bf16.xpose.msra.mxu0 0
    %584 = vmatprep.subr.bf16.mxu0 0
    %585 = vmatpush1.bf16.xpose.msra.mxu0 0
    %586 = vmatprep.subr.bf16.mxu0 0
    %587 = vmatpush1.bf16.xpose.msra.mxu0 0
    %588 = vmatprep.subr.bf16.mxu0 0
    %589 = vmatpush1.bf16.xpose.msra.mxu0 0
    %590 = vmatprep.subr.bf16.mxu0 0
    %591 = vmatpush1.bf16.xpose.msra.mxu0 0
    %592 = vmatprep.subr.bf16.mxu0 0
    %593 = vmatpush1.bf16.xpose.msra.mxu0 0
    %594 = vmatprep.mubr.bf16.mxu0 0
    %595 = vmatmul.mubr.bf16.gmra.mrb[0].mxu0 %v558
    %v596 = vpop.f32.mrb[0].mxu0
    %v597 = vadd.f32 0.0, %v596
    %v598 = vpop.f32.mrb[0].mxu0
    %v599 = vpop.f32.mrb[0].mxu0
    %v600 = vpop.f32.mrb[0].mxu0
    %601 = vdwg.mxu0
    %602 = vmatprep.subr.bf16.mxu0 0
    %603 = vmatpush1.bf16.xpose.msra.mxu0 %v462
    %604 = vmatprep.subr.bf16.mxu0 0
    %605 = vmatpush1.bf16.xpose.msra.mxu0 0
    %606 = vmatprep.subr.bf16.mxu0 0
    %607 = vmatpush1.bf16.xpose.msra.mxu0 0
    %608 = vmatprep.subr.bf16.mxu0 0
    %609 = vmatpush1.bf16.xpose.msra.mxu0 0
    %610 = vmatprep.subr.bf16.mxu0 0
    %611 = vmatpush1.bf16.xpose.msra.mxu0 0
    %612 = vmatprep.subr.bf16.mxu0 0
    %613 = vmatpush1.bf16.xpose.msra.mxu0 0
    %614 = vmatprep.subr.bf16.mxu0 0
    %615 = vmatpush1.bf16.xpose.msra.mxu0 0
    %616 = vmatprep.subr.bf16.mxu0 0
    %617 = vmatpush1.bf16.xpose.msra.mxu0 0
    %618 = vmatprep.subr.bf16.mxu0 0
    %619 = vmatpush1.bf16.xpose.msra.mxu0 0
    %620 = vmatprep.subr.bf16.mxu0 0
    %621 = vmatpush1.bf16.xpose.msra.mxu0 0
    %622 = vmatprep.subr.bf16.mxu0 0
    %623 = vmatpush1.bf16.xpose.msra.mxu0 0
    %624 = vmatprep.subr.bf16.mxu0 0
    %625 = vmatpush1.bf16.xpose.msra.mxu0 0
    %626 = vmatprep.subr.bf16.mxu0 0
    %627 = vmatpush1.bf16.xpose.msra.mxu0 0
    %628 = vmatprep.subr.bf16.mxu0 0
    %629 = vmatpush1.bf16.xpose.msra.mxu0 0
    %630 = vmatprep.subr.bf16.mxu0 0
    %631 = vmatpush1.bf16.xpose.msra.mxu0 0
    %632 = vmatprep.subr.bf16.mxu0 0
    %633 = vmatpush1.bf16.xpose.msra.mxu0 0
    %634 = vmatprep.mubr.bf16.mxu0 0
    %635 = vmatmul.mubr.bf16.gmra.mrb[0].mxu0 %v559
    %v636 = vpop.f32.mrb[0].mxu0
    %v637 = vadd.f32 0.0, %v636
    %v638 = vpop.f32.mrb[0].mxu0
    %v639 = vpop.f32.mrb[0].mxu0
    %v640 = vpop.f32.mrb[0].mxu0
    %641 = vdwg.mxu0
    %vm642 = vcmask 130048
    %v643 = vsel %vm642, %v597, -inf
    %644 = vmax.xlane.f32.xlu0 %v643
    %v645 = vpop.xlane.xlu0 %644
    %v646 = vsel %vm642, %v637, -inf
    %647 = vmax.xlane.f32.xlu0 %v646
    %v648 = vpop.xlane.xlu0 %647
    %v649 = vsub.f32 %v597, %v645
    %v650 = vsub.f32 %v637, %v648
    %v651 = vmul.f32 %v649, 1.442695
    %v652 = vpow.pop %v651
    %v653 = vmul.f32 %v650, 1.442695
    %v654 = vpow.pop %v653
    %v655 = vsel %vm642, %v652, 0.0
    %656 = vadd.xlane.f32.xlu0 %v655
    %v657 = vpop.xlane.xlu0 %656
    %v658 = vsel %vm642, %v654, 0.0
    %659 = vadd.xlane.f32.xlu0 %v658
    %v660 = vpop.xlane.xlu0 %659
    %v661 = vrcp.pop %v657
    %v662 = vrcp.pop %v660
    %v663 = vmul.f32 %v652, %v661
    %v664 = vmul.f32 %v654, %v662
    %665 = vst.msk [vmem:[#allocation4] sm:$0xff] %vm642, %v663
    %666 = vst.msk [vmem:[#allocation4 + $0x8] sm:$0xff] %vm642, %v664
    %v667 = vpack.c.bf16 %v663, %v663
    %v668 = vpack.c.bf16 %v664, %v664
    %v670 = vsel %vm642, %v667, 0
    %672 = vmatprep.subr.bf16.mxu0 0
    %673 = vmatpush1.bf16.msra.mxu0 %v461
    %674 = vmatprep.subr.bf16.mxu0 0
    %675 = vmatpush1.bf16.msra.mxu0 0
    %676 = vmatprep.subr.bf16.mxu0 0
    %677 = vmatpush1.bf16.msra.mxu0 0
    %678 = vmatprep.subr.bf16.mxu0 0
    %679 = vmatpush1.bf16.msra.mxu0 0
    %680 = vmatprep.subr.bf16.mxu0 0
    %681 = vmatpush1.bf16.msra.mxu0 0
    %682 = vmatprep.subr.bf16.mxu0 0
    %683 = vmatpush1.bf16.msra.mxu0 0
    %684 = vmatprep.subr.bf16.mxu0 0
    %685 = vmatpush1.bf16.msra.mxu0 0
    %686 = vmatprep.subr.bf16.mxu0 0
    %687 = vmatpush1.bf16.msra.mxu0 0
    %688 = vmatprep.subr.bf16.mxu0 0
    %689 = vmatpush1.bf16.msra.mxu0 0
    %690 = vmatprep.subr.bf16.mxu0 0
    %691 = vmatpush1.bf16.msra.mxu0 0
    %692 = vmatprep.subr.bf16.mxu0 0
    %693 = vmatpush1.bf16.msra.mxu0 0
    %694 = vmatprep.subr.bf16.mxu0 0
    %695 = vmatpush1.bf16.msra.mxu0 0
    %696 = vmatprep.subr.bf16.mxu0 0
    %697 = vmatpush1.bf16.msra.mxu0 0
    %698 = vmatprep.subr.bf16.mxu0 0
    %699 = vmatpush1.bf16.msra.mxu0 0
    %700 = vmatprep.subr.bf16.mxu0 0
    %701 = vmatpush1.bf16.msra.mxu0 0
    %702 = vmatprep.subr.bf16.mxu0 0
    %703 = vmatpush1.bf16.msra.mxu0 0
    %704 = vmatprep.mubr.bf16.mxu0 0
    %705 = vmatmul.mubr.bf16.gmra.mrb[0].mxu0 %v670
    %v706 = vpop.f32.mrb[0].mxu0
    %v707 = vadd.f32 0.0, %v706
    %v708 = vpop.f32.mrb[0].mxu0
    %v709 = vpop.f32.mrb[0].mxu0
    %v710 = vpop.f32.mrb[0].mxu0
    %711 = vdwg.mxu0
    %v713 = vsel %vm642, %v668, 0
    %715 = vmatprep.subr.bf16.mxu0 0
    %716 = vmatpush1.bf16.msra.mxu0 %v462
    %717 = vmatprep.subr.bf16.mxu0 0
    %718 = vmatpush1.bf16.msra.mxu0 0
    %719 = vmatprep.subr.bf16.mxu0 0
    %720 = vmatpush1.bf16.msra.mxu0 0
    %721 = vmatprep.subr.bf16.mxu0 0
    %722 = vmatpush1.bf16.msra.mxu0 0
    %723 = vmatprep.subr.bf16.mxu0 0
    %724 = vmatpush1.bf16.msra.mxu0 0
    %725 = vmatprep.subr.bf16.mxu0 0
    %726 = vmatpush1.bf16.msra.mxu0 0
    %727 = vmatprep.subr.bf16.mxu0 0
    %728 = vmatpush1.bf16.msra.mxu0 0
    %729 = vmatprep.subr.bf16.mxu0 0
    %730 = vmatpush1.bf16.msra.mxu0 0
    %731 = vmatprep.subr.bf16.mxu0 0
    %732 = vmatpush1.bf16.msra.mxu0 0
    %733 = vmatprep.subr.bf16.mxu0 0
    %734 = vmatpush1.bf16.msra.mxu0 0
    %735 = vmatprep.subr.bf16.mxu0 0
    %736 = vmatpush1.bf16.msra.mxu0 0
    %737 = vmatprep.subr.bf16.mxu0 0
    %738 = vmatpush1.bf16.msra.mxu0 0
    %739 = vmatprep.subr.bf16.mxu0 0
    %740 = vmatpush1.bf16.msra.mxu0 0
    %741 = vmatprep.subr.bf16.mxu0 0
    %742 = vmatpush1.bf16.msra.mxu0 0
    %743 = vmatprep.subr.bf16.mxu0 0
    %744 = vmatpush1.bf16.msra.mxu0 0
    %745 = vmatprep.subr.bf16.mxu0 0
    %746 = vmatpush1.bf16.msra.mxu0 0
    %747 = vmatprep.mubr.bf16.mxu0 0
    %748 = vmatmul.mubr.bf16.gmra.mrb[0].mxu0 %v713
    %v749 = vpop.f32.mrb[0].mxu0
    %v750 = vadd.f32 0.0, %v749
    %v751 = vpop.f32.mrb[0].mxu0
    %v752 = vpop.f32.mrb[0].mxu0
    %v753 = vpop.f32.mrb[0].mxu0
    %754 = vdwg.mxu0
    %v755 = vadd.f32 %v707, %v548
    %v756 = vadd.f32 %v750, %v551
    %v757 = vld [vmem:[%s6] sm:$0x1]
    %v758 = vld [vmem:[%s7] sm:$0x1]
    %759 = vadd.xlane.f32.xlu0 %v755
    %v760 = vpop.xlane.xlu0 %759
    %761 = vadd.xlane.f32.xlu0 %v756
    %v762 = vpop.xlane.xlu0 %761
    %v763 = vrcp.pop 128.0
    %v764 = vmul.f32 %v760, %v763
    %v765 = vmul.f32 %v762, %v763
    %v766 = vsub.f32 %v755, %v764
    %v767 = vsub.f32 %v756, %v765
    %v768 = vmul.f32 %v766, %v766
    %v769 = vmul.f32 %v767, %v767
    %770 = vadd.xlane.f32.xlu0 %v768
    %v771 = vpop.xlane.xlu0 %770
    %772 = vadd.xlane.f32.xlu0 %v769
    %v773 = vpop.xlane.xlu0 %772
    %v774 = vmul.f32 %v771, %v763
    %v775 = vmul.f32 %v773, %v763
    %v776 = vadd.f32 %v774, 1e-05
    %v777 = vadd.f32 %v775, 1e-05
    %v778 = vrsqrt.pop %v776
    %v779 = vrsqrt.pop %v777
    %v780 = vmul.f32 %v766, %v778
    %v781 = vmul.f32 %v767, %v779
    %v783 = vlaneseq
    %v784 = vshrl.u32 %v783, 7
    %v785 = vsub.s32 0, %v784
    %v786 = vrot.slane %v757, %v785
    %v788 = vmul.f32 %v780, %v786
    %v789 = vmul.f32 %v781, %v786
    %v791 = vlaneseq
    %v792 = vshrl.u32 %v791, 7
    %v793 = vsub.s32 0, %v792
    %v794 = vrot.slane %v758, %v793
    %v796 = vadd.f32 %v788, %v794
    %v797 = vadd.f32 %v789, %v794
    %v798 = vpack.c.bf16 %v797, %v796
    %v799 = vld [vmem:[%s8] sm:$0xf]
    %v800 = vld [vmem:[%s8 + $0x4] sm:$0xf]
    %v801 = vld [vmem:[%s8 + $0x8] sm:$0xf]
    %v802 = vld [vmem:[%s8 + $0xc] sm:$0xf]
    %v803 = vld [vmem:[%s8 + $0x10] sm:$0xf]
    %v804 = vld [vmem:[%s8 + $0x14] sm:$0xf]
    %v805 = vld [vmem:[%s8 + $0x18] sm:$0xf]
    %v806 = vld [vmem:[%s8 + $0x1c] sm:$0xf]
    %v807 = vld [vmem:[%s8 + $0x20] sm:$0xf]
    %v808 = vld [vmem:[%s8 + $0x24] sm:$0xf]
    %v809 = vld [vmem:[%s8 + $0x28] sm:$0xf]
    %v810 = vld [vmem:[%s8 + $0x2c] sm:$0xf]
    %v811 = vld [vmem:[%s8 + $0x30] sm:$0xf]
    %v812 = vld [vmem:[%s8 + $0x34] sm:$0xf]
    %v813 = vld [vmem:[%s8 + $0x38] sm:$0xf]
    %v814 = vld [vmem:[%s8 + $0x3c] sm:$0xf]
    %v815 = vld [vmem:[%s9] sm:$0x1]
    %v817 = vlaneseq
    %v818 = vshrl.u32 %v817, 7
    %v819 = vsub.s32 0, %v818
    %v820 = vrot.slane %v815, %v819
    %v838 = vunpack.c.l.b16 %v799
    %v839 = vunpack.c.l.b16 %v800
    %v840 = vunpack.c.l.b16 %v801
    %v841 = vunpack.c.l.b16 %v802
    %v842 = vunpack.c.l.b16 %v803
    %v843 = vunpack.c.l.b16 %v804
    %v844 = vunpack.c.l.b16 %v805
    %v845 = vunpack.c.l.b16 %v806
    %v846 = vunpack.c.l.b16 %v807
    %v847 = vunpack.c.l.b16 %v808
    %v848 = vunpack.c.l.b16 %v809
    %v849 = vunpack.c.l.b16 %v810
    %v850 = vunpack.c.l.b16 %v811
    %v851 = vunpack.c.l.b16 %v812
    %v852 = vunpack.c.l.b16 %v813
    %v853 = vunpack.c.l.b16 %v814
    %v854 = vpack.c.b16 %v839, %v838
    %v855 = vpack.c.b16 %v841, %v840
    %v856 = vpack.c.b16 %v843, %v842
    %v857 = vpack.c.b16 %v845, %v844
    %v858 = vpack.c.b16 %v847, %v846
    %v859 = vpack.c.b16 %v849, %v848
    %v860 = vpack.c.b16 %v851, %v850
    %v861 = vpack.c.b16 %v853, %v852
    %870 = vmatprep.subr.bf16.mxu0 0
    %871 = vmatpush1.bf16.msra.mxu0 %v854
    %872 = vmatprep.subr.bf16.mxu0 0
    %873 = vmatpush1.bf16.msra.mxu0 %v855
    %874 = vmatprep.subr.bf16.mxu0 0
    %875 = vmatpush1.bf16.msra.mxu0 %v856
    %876 = vmatprep.subr.bf16.mxu0 0
    %877 = vmatpush1.bf16.msra.mxu0 %v857
    %878 = vmatprep.subr.bf16.mxu0 0
    %879 = vmatpush1.bf16.msra.mxu0 %v858
    %880 = vmatprep.subr.bf16.mxu0 0
    %881 = vmatpush1.bf16.msra.mxu0 %v859
    %882 = vmatprep.subr.bf16.mxu0 0
    %883 = vmatpush1.bf16.msra.mxu0 %v860
    %884 = vmatprep.subr.bf16.mxu0 0
    %885 = vmatpush1.bf16.msra.mxu0 %v861
    %886 = vmatprep.subr.bf16.mxu0 0
    %887 = vmatpush1.bf16.msra.mxu0 0
    %888 = vmatprep.subr.bf16.mxu0 0
    %889 = vmatpush1.bf16.msra.mxu0 0
    %890 = vmatprep.subr.bf16.mxu0 0
    %891 = vmatpush1.bf16.msra.mxu0 0
    %892 = vmatprep.subr.bf16.mxu0 0
    %893 = vmatpush1.bf16.msra.mxu0 0
    %894 = vmatprep.subr.bf16.mxu0 0
    %895 = vmatpush1.bf16.msra.mxu0 0
    %896 = vmatprep.subr.bf16.mxu0 0
    %897 = vmatpush1.bf16.msra.mxu0 0
    %898 = vmatprep.subr.bf16.mxu0 0
    %899 = vmatpush1.bf16.msra.mxu0 0
    %900 = vmatprep.subr.bf16.mxu0 0
    %901 = vmatpush1.bf16.msra.mxu0 0
    %902 = vmatprep.mubr.bf16.mxu0 0
    %903 = vmatmul.mubr.bf16.gmra.mrb[0].mxu0 %v798
    %v904 = vpop.f32.mrb[0].mxu0
    %v905 = vadd.f32 %v820, %v904
    %v906 = vpop.f32.mrb[0].mxu0
    %v907 = vpop.f32.mrb[0].mxu0
    %v908 = vadd.f32 %v820, %v907
    %v909 = vpop.f32.mrb[0].mxu0
    %910 = vdwg.mxu0
    %v911 = vmax.f32 %v905, 0.0
    %v912 = vmax.f32 %v908, 0.0
    %v913 = vpack.c.bf16 %v912, %v911
    %v914 = vld [vmem:[%s10] sm:$0xf]
    %v915 = vld [vmem:[%s10 + $0x4] sm:$0xf]
    %v916 = vld [vmem:[%s10 + $0x8] sm:$0xf]
    %v917 = vld [vmem:[%s10 + $0xc] sm:$0xf]
    %v918 = vld [vmem:[%s10 + $0x10] sm:$0xf]
    %v919 = vld [vmem:[%s10 + $0x14] sm:$0xf]
    %v920 = vld [vmem:[%s10 + $0x18] sm:$0xf]
    %v921 = vld [vmem:[%s10 + $0x1c] sm:$0xf]
    %v922 = vld [vmem:[%s10 + $0x20] sm:$0xf]
    %v923 = vld [vmem:[%s10 + $0x24] sm:$0xf]
    %v924 = vld [vmem:[%s10 + $0x28] sm:$0xf]
    %v925 = vld [vmem:[%s10 + $0x2c] sm:$0xf]
    %v926 = vld [vmem:[%s10 + $0x30] sm:$0xf]
    %v927 = vld [vmem:[%s10 + $0x34] sm:$0xf]
    %v928 = vld [vmem:[%s10 + $0x38] sm:$0xf]
    %v929 = vld [vmem:[%s10 + $0x3c] sm:$0xf]
    %v930 = vld [vmem:[%s11] sm:$0x1]
    %v932 = vlaneseq
    %v933 = vshrl.u32 %v932, 7
    %v934 = vsub.s32 0, %v933
    %v935 = vrot.slane %v930, %v934
    %v953 = vunpack.c.l.b16 %v914
    %v954 = vunpack.c.l.b16 %v915
    %v955 = vunpack.c.l.b16 %v916
    %v956 = vunpack.c.l.b16 %v917
    %v957 = vunpack.c.l.b16 %v918
    %v958 = vunpack.c.l.b16 %v919
    %v959 = vunpack.c.l.b16 %v920
    %v960 = vunpack.c.l.b16 %v921
    %v961 = vunpack.c.l.b16 %v922
    %v962 = vunpack.c.l.b16 %v923
    %v963 = vunpack.c.l.b16 %v924
    %v964 = vunpack.c.l.b16 %v925
    %v965 = vunpack.c.l.b16 %v926
    %v966 = vunpack.c.l.b16 %v927
    %v967 = vunpack.c.l.b16 %v928
    %v968 = vunpack.c.l.b16 %v929
    %v969 = vpack.c.b16 %v954, %v953
    %v970 = vpack.c.b16 %v956, %v955
    %v971 = vpack.c.b16 %v958, %v957
    %v972 = vpack.c.b16 %v960, %v959
    %v973 = vpack.c.b16 %v962, %v961
    %v974 = vpack.c.b16 %v964, %v963
    %v975 = vpack.c.b16 %v966, %v965
    %v976 = vpack.c.b16 %v968, %v967
    %985 = vmatprep.subr.bf16.mxu0 0
    %986 = vmatpush1.bf16.msra.mxu0 %v969
    %987 = vmatprep.subr.bf16.mxu0 0
    %988 = vmatpush1.bf16.msra.mxu0 %v970
    %989 = vmatprep.subr.bf16.mxu0 0
    %990 = vmatpush1.bf16.msra.mxu0 %v971
    %991 = vmatprep.subr.bf16.mxu0 0
    %992 = vmatpush1.bf16.msra.mxu0 %v972
    %993 = vmatprep.subr.bf16.mxu0 0
    %994 = vmatpush1.bf16.msra.mxu0 %v973
    %995 = vmatprep.subr.bf16.mxu0 0
    %996 = vmatpush1.bf16.msra.mxu0 %v974
    %997 = vmatprep.subr.bf16.mxu0 0
    %998 = vmatpush1.bf16.msra.mxu0 %v975
    %999 = vmatprep.subr.bf16.mxu0 0
    %1000 = vmatpush1.bf16.msra.mxu0 %v976
    %1001 = vmatprep.subr.bf16.mxu0 0
    %1002 = vmatpush1.bf16.msra.mxu0 0
    %1003 = vmatprep.subr.bf16.mxu0 0
    %1004 = vmatpush1.bf16.msra.mxu0 0
    %1005 = vmatprep.subr.bf16.mxu0 0
    %1006 = vmatpush1.bf16.msra.mxu0 0
    %1007 = vmatprep.subr.bf16.mxu0 0
    %1008 = vmatpush1.bf16.msra.mxu0 0
    %1009 = vmatprep.subr.bf16.mxu0 0
    %1010 = vmatpush1.bf16.msra.mxu0 0
    %1011 = vmatprep.subr.bf16.mxu0 0
    %1012 = vmatpush1.bf16.msra.mxu0 0
    %1013 = vmatprep.subr.bf16.mxu0 0
    %1014 = vmatpush1.bf16.msra.mxu0 0
    %1015 = vmatprep.subr.bf16.mxu0 0
    %1016 = vmatpush1.bf16.msra.mxu0 0
    %1017 = vmatprep.mubr.bf16.mxu0 0
    %1018 = vmatmul.mubr.bf16.gmra.mrb[0].mxu0 %v913
    %v1019 = vpop.f32.mrb[0].mxu0
    %v1020 = vadd.f32 %v935, %v1019
    %v1021 = vpop.f32.mrb[0].mxu0
    %v1022 = vpop.f32.mrb[0].mxu0
    %v1023 = vadd.f32 %v935, %v1022
    %v1024 = vpop.f32.mrb[0].mxu0
    %1025 = vdwg.mxu0
    %v1026 = vadd.f32 %v796, %v1020
    %v1027 = vadd.f32 %v797, %v1023
    %v1028 = vld [vmem:[%s12] sm:$0x1]
    %v1029 = vld [vmem:[%s13] sm:$0x1]
    %1030 = vadd.xlane.f32.xlu0 %v1026
    %v1031 = vpop.xlane.xlu0 %1030
    %1032 = vadd.xlane.f32.xlu0 %v1027
    %v1033 = vpop.xlane.xlu0 %1032
    %v1034 = vmul.f32 %v1031, %v763
    %v1035 = vmul.f32 %v1033, %v763
    %v1036 = vsub.f32 %v1026, %v1034
    %v1037 = vsub.f32 %v1027, %v1035
    %v1038 = vmul.f32 %v1036, %v1036
    %v1039 = vmul.f32 %v1037, %v1037
    %1040 = vadd.xlane.f32.xlu0 %v1038
    %v1041 = vpop.xlane.xlu0 %1040
    %1042 = vadd.xlane.f32.xlu0 %v1039
    %v1043 = vpop.xlane.xlu0 %1042
    %v1044 = vmul.f32 %v1041, %v763
    %v1045 = vmul.f32 %v1043, %v763
    %v1046 = vadd.f32 %v1044, 1e-05
    %v1047 = vadd.f32 %v1045, 1e-05
    %v1048 = vrsqrt.pop %v1046
    %v1049 = vrsqrt.pop %v1047
    %v1050 = vmul.f32 %v1036, %v1048
    %v1051 = vmul.f32 %v1037, %v1049
    %v1053 = vlaneseq
    %v1054 = vshrl.u32 %v1053, 7
    %v1055 = vsub.s32 0, %v1054
    %v1056 = vrot.slane %v1028, %v1055
    %v1058 = vmul.f32 %v1050, %v1056
    %v1059 = vmul.f32 %v1051, %v1056
    %v1061 = vlaneseq
    %v1062 = vshrl.u32 %v1061, 7
    %v1063 = vsub.s32 0, %v1062
    %v1064 = vrot.slane %v1029, %v1063
    %v1066 = vadd.f32 %v1058, %v1064
    %v1067 = vadd.f32 %v1059, %v1064
    %1068 = vst [vmem:[#allocation2] sm:$0xff] %v1066
    %1069 = vst [vmem:[#allocation2 + $0x8] sm:$0xff] %v1067
    // Predicated region
    $region58: #{scene_encoded_transformer.1} parent=1 // pred_check
      _
    $region59: #{scene_encoded_transformer.1} parent=1 // pred_check_branch
      %1071 = sbr.rel (0) target = $region61
    $region60: #{scene_encoded_transformer.1} parent=1 // pred_region
      %s1073 = ssub.s32 256, 256
      %1074 = vsyncadd [#allocation3], %s1073
      %s1075 = sshll.u32 [#allocation2], 4
      %s1076 = int_to_ptr.vmem [resolvable:$true] %s1075
      %1081 = dma.vmem_to_hbm [thread:$0]  %s1076, 256, %s14, [#allocation3], 128, 128, 8
    $region61: #{scene_encoded_transformer.1} parent=1 // pred_fallthru
      _
    // Predicated region
    $region62: #{scene_encoded_transformer.1} parent=1 // pred_check
      _
    $region63: #{scene_encoded_transformer.1} parent=1 // pred_check_branch
      %1083 = sbr.rel (0) target = $region65
    $region64: #{scene_encoded_transformer.1} parent=1 // pred_region
      %s1085 = ssub.s32 256, 256
      %1086 = vsyncadd [#allocation5], %s1085
      %s1087 = sshll.u32 [#allocation4], 4
      %s1088 = int_to_ptr.vmem [resolvable:$true] %s1087
      %1093 = dma.vmem_to_hbm [thread:$0]  %s1088, 256, %s15, [#allocation5], 128, 128, 8
    $region65: #{scene_encoded_transformer.1} parent=1 // pred_fallthru
      _
    // Predicated region
    $region66: #{scene_encoded_transformer.1} parent=1 // pred_check
      _
    $region67: #{scene_encoded_transformer.1} parent=1 // pred_check_branch
      %1095 = sbr.rel (0) target = $region69
    $region68: #{scene_encoded_transformer.1} parent=1 // pred_region
      %1096 = dma.done [#allocation3], 256
    $region69: #{scene_encoded_transformer.1} parent=1 // pred_fallthru
      _
    // Predicated region
    $region70: #{scene_encoded_transformer.1} parent=1 // pred_check
      _
    $region71: #{scene_encoded_transformer.1} parent=1 // pred_check_branch
      %1098 = sbr.rel (0) target = $region73
    $region72: #{scene_encoded_transformer.1} parent=1 // pred_region
      %1099 = dma.done [#allocation5], 256
    $region73: #{scene_encoded_transformer.1} parent=1 // pred_fallthru
      _
    %1100 = vsyncpa [#allocation3], 1
    %1101 = vsyncpa [#allocation5], 1

</llo_original>
